<compile_context>
chip_gen: v7x
topology: tpu7x:2x2x1
jax: 0.10.0
libtpu: 0.0.40
codegen_flags: <defaults>
</compile_context>

<pallas_src>
import functools

import jax
import jax.numpy as jnp
from jax import lax
from jax.experimental import pallas as pl
from jax.experimental.pallas import tpu as pltpu


# ---------------------------------------------------------------------------
# Kernels
# ---------------------------------------------------------------------------

def _pool_kernel_fused(pm_ref, x_ref, o_ref, *, inv_area):
    """Small-patch path: one matmul and one lane-dense store per grid step.

    pm_ref: (patch*patch, H*W)  0/1 pooling mask (exact ones, scale applied after)
    x_ref : (c_blk, H*W)        channel chunk of one image, spatial flattened
    o_ref : (patch*patch, c_blk)
    """
    res = lax.dot_general(
        pm_ref[...], x_ref[...],
        dimension_numbers=(((1,), (1,)), ((), ())),   # NT form: contract lane dims
        preferred_element_type=jnp.float32,
    )
    o_ref[...] = (res * inv_area).astype(o_ref.dtype)


def _pool_kernel_rows(pm_ref, x_ref, o_ref, *, inv_area):
    """General path: one matmul per pooled output row (kh folded into the matrix).

    pm_ref: (patch, kh*W)          0/1 pooling mask over one H-window of rows
    x_ref : (c_blk, g_blk, kh*W)   g_blk pooled-row groups of a channel chunk
    o_ref : (g_blk, patch, c_blk)
    """
    g_blk = x_ref.shape[1]
    for r in range(g_blk):                            # static, unrolled (g_blk <= patch)
        res = lax.dot_general(
            pm_ref[...], x_ref[:, r, :],
            dimension_numbers=(((1,), (1,)), ((), ())),
            preferred_element_type=jnp.float32,
        )
        o_ref[r] = (res * inv_area).astype(o_ref.dtype)


# ---------------------------------------------------------------------------
# Tiling helpers (padded-VMEM aware)
# ---------------------------------------------------------------------------

def _round_up(x, m):
    return ((x + m - 1) // m) * m


def _sublane(dtype):
    # sublane packing: 8 rows for 4-byte dtypes, 16 for 2-byte, 32 for 1-byte
    return max(8, 32 // jnp.dtype(dtype).itemsize)


def _c_candidates(C):
    if C % 128 == 0:
        return [c for c in range(128, C + 1, 128) if C % c == 0]
    # TODO(synk): channel counts not divisible by 128 fall back to one full-C chunk
    # (lane-masked stores if C < 128); very large non-128-divisible C is not chunked.
    return [C]


def _g_candidates(G, sub):
    cands = {G}
    for g in range(sub, G, sub):
        if G % g == 0:
            cands.add(g)
    return sorted(cands)


def _in_block_bytes(c_blk, g_blk, F, sub, itemsize, fused):
    """Padded VMEM bytes of one input block (last two dims padded to (sublane, 128))."""
    if fused:   # block (c_blk, F)
        return _round_up(c_blk, sub) * _round_up(F, 128) * itemsize
    # block (c_blk, g_blk, F)
    return c_blk * _round_up(g_blk, sub) * _round_up(F, 128) * itemsize


def _choose_tiling(B, C, G, F, sub, itemsize, budget, fused, min_grid_steps):
    c_cands = _c_candidates(C)
    g_cands = [1] if fused else _g_candidates(G, sub)
    chosen = None
    for c in reversed(c_cands):                       # prefer wide (lane-dense) stores
        for g in reversed(g_cands):
            if _in_block_bytes(c, g, F, sub, itemsize, fused) <= budget:
                chosen = (c, g)
                break
        if chosen is not None:
            break
    if chosen is None:                                # nothing fits: take minimum block
        chosen = (c_cands[0], g_cands[0])
    c_blk, g_blk = chosen

    # v7x has 2 TensorCores: keep a few parallel grid steps when splitting is possible.
    def steps(c, g):
        return B * (G // g) * (C // c)

    while steps(c_blk, g_blk) < min_grid_steps:
        ci, gi = c_cands.index(c_blk), g_cands.index(g_blk)
        if ci > 0:
            c_blk = c_cands[ci - 1]
        elif gi > 0:
            g_blk = g_cands[gi - 1]
        else:
            break
    return c_blk, g_blk


def _vmem_capacity_bytes():
    try:
        info = pltpu.get_tpu_info()
        cap = getattr(info, "vmem_capacity_bytes", None)
        if cap:
            return int(cap)
    except Exception:
        pass
    return 64 << 20      # conservative: v7x per-TensorCore physical VMEM


# ---------------------------------------------------------------------------
# Wrapper
# ---------------------------------------------------------------------------

def pool_embedding(x_nchw, patch, *, target_block_bytes=8 << 20, min_grid_steps=4):
    """x_nchw: (B, C, H, W). Returns (B, patch*patch, C) — AdaptiveAvgPool2d + rearrange."""
    B, C, H, W = x_nchw.shape
    # TODO(synk): general AdaptiveAvgPool2d (non-divisible, overlapping windows) not implemented.
    assert H % patch == 0 and W % patch == 0, "only the divisible AdaptiveAvgPool2d case is supported"
    kh, kw = H // patch, W // patch
    inv_area = 1.0 / float(kh * kw)

    dtype = x_nchw.dtype
    itemsize = jnp.dtype(dtype).itemsize
    sub = _sublane(dtype)

    F_full = H * W
    F_row = kh * W
    c_min = _c_candidates(C)[0]

    # Full-spatial fusion only when patch is small (AI ~ patch^2/2 stays << MXU:HBM ratio)
    # and the minimal padded block fits the budget.
    fused = (patch <= 8) and (
        _in_block_bytes(c_min, 1, F_full, sub, itemsize, True) <= target_block_bytes)

    if fused:
        F = F_full
        rows_out = patch * patch
        c_blk, g_blk = _choose_tiling(B, C, 1, F, sub, itemsize,
                                      target_block_bytes, True, min_grid_steps)
        xr = x_nchw.reshape(B, C, F)                        # free view
        grid = (B, C // c_blk)
        in_specs = [
            pl.BlockSpec((rows_out, F), lambda b, c: (0, 0)),          # resident pool mat
            pl.BlockSpec((None, c_blk, F), lambda b, c: (b, c, 0)),
        ]
        out_arr_shape = (B, rows_out, C)
        out_spec = pl.BlockSpec((None, rows_out, c_blk), lambda b, c: (b, 0, c))
        kernel = functools.partial(_pool_kernel_fused, inv_area=inv_area)
        out_block_bytes = _round_up(rows_out, sub) * _round_up(c_blk, 128) * itemsize
    else:
        F = F_row
        rows_out = patch
        c_blk, g_blk = _choose_tiling(B, C, patch, F, sub, itemsize,
                                      target_block_bytes, False, min_grid_steps)
        xr = x_nchw.reshape(B, C, patch, F)                 # free view: H -> (patch, kh*W)
        grid = (B, patch // g_blk, C // c_blk)
        in_specs = [
            pl.BlockSpec((rows_out, F), lambda b, g, c: (0, 0)),
            pl.BlockSpec((None, c_blk, g_blk, F), lambda b, g, c: (b, c, g, 0)),
        ]
        out_arr_shape = (B, patch, patch, C)
        out_spec = pl.BlockSpec((None, g_blk, patch, c_blk), lambda b, g, c: (b, g, 0, c))
        kernel = functools.partial(_pool_kernel_rows, inv_area=inv_area)
        out_block_bytes = g_blk * _round_up(rows_out, sub) * _round_up(c_blk, 128) * itemsize

    # Pooling mask with exact 0/1 entries (bf16-safe); 1/(kh*kw) applied to the tiny result.
    f = jnp.arange(F, dtype=jnp.int32)
    if fused:
        owner = ((f // W) // kh) * patch + (f % W) // kw    # output row owning column f
    else:
        owner = (f % W) // kw
    pool_mat = (jnp.arange(rows_out, dtype=jnp.int32)[:, None] == owner[None, :]).astype(dtype)

    # Padded, double-buffered VMEM footprint -> explicit scoped-VMEM limit (per review).
    in_block_bytes = _in_block_bytes(c_blk, g_blk, F, sub, itemsize, fused)
    pm_block_bytes = _round_up(rows_out, sub) * _round_up(F, 128) * itemsize
    footprint = 2 * (in_block_bytes + pm_block_bytes + out_block_bytes) + (2 << 20)
    vmem_cap = _vmem_capacity_bytes()
    vmem_limit = int(min(vmem_cap - (4 << 20), max(footprint, 32 << 20)))

    out = pl.pallas_call(
        kernel,
        out_shape=jax.ShapeDtypeStruct(out_arr_shape, dtype),
        grid=grid,
        in_specs=in_specs,
        out_specs=out_spec,
        compiler_params=pltpu.CompilerParams(
            dimension_semantics=("parallel",) * len(grid),
            vmem_limit_bytes=vmem_limit,
        ),
    )(pool_mat, xr)

    # Free view: (B, patch, patch, C) or (B, patch^2, C) -> (B, patch^2, C).
    return out.reshape(B, patch * patch, C)


# ---------------------------------------------------------------------------
# Reference + tests
# ---------------------------------------------------------------------------

def _reference(x_nchw, patch):
    """Pure-JAX reference of the PyTorch forward (divisible case)."""
    B, C, H, W = x_nchw.shape
    kh, kw = H // patch, W // patch
    xw = x_nchw.reshape(B, C, patch, kh, patch, kw)
    pooled = xw.mean(axis=(3, 5))                           # (B, C, patch, patch)
    return jnp.transpose(pooled.reshape(B, C, patch * patch), (0, 2, 1))


if __name__ == "__main__":
    key = jax.random.PRNGKey(0)

    # Test 1: module-spec small shape — fused path (patch <= 8, tiny spatial).
    B, C, H, W = 2, 4, 16, 16
    patch = 4
    x = jax.random.normal(key, (B, C, H, W), dtype=jnp.float32)
    out = jax.block_until_ready(pool_embedding(x, patch))
    ref = _reference(x, patch)
    assert out.shape == (B, patch * patch, C), out.shape
    assert jnp.allclose(out, ref, atol=1e-5, rtol=1e-5), "mismatch vs reference (test 1)"

    # Test 2: per-row path with channel chunking (tiny budget forces c_blk = 128).
    x2 = jax.random.normal(jax.random.PRNGKey(0), (1, 256, 32, 32), dtype=jnp.float32)
    out2 = jax.block_until_ready(pool_embedding(x2, 8, target_block_bytes=16 * 1024))
    ref2 = _reference(x2, 8)
    assert out2.shape == (1, 64, 256), out2.shape
    assert jnp.allclose(out2, ref2, atol=1e-5, rtol=1e-5), "mismatch vs reference (test 2)"

    # Test 3: per-row path with patch-row-group splitting (patch = 16 > fusion limit).
    x3 = jax.random.normal(jax.random.PRNGKey(0), (1, 128, 64, 64), dtype=jnp.float32)
    out3 = jax.block_until_ready(pool_embedding(x3, 16, target_block_bytes=32 * 1024))
    ref3 = _reference(x3, 16)
    assert out3.shape == (1, 256, 128), out3.shape
    assert jnp.allclose(out3, ref3, atol=1e-5, rtol=1e-5), "mismatch vs reference (test 3)"

    # Test 4: bf16 input — exact-ones pooling matrix on the MXU, f32 accumulate, scale after.
    xb = jax.random.normal(jax.random.PRNGKey(0), (2, 4, 16, 16), dtype=jnp.bfloat16)
    outb = jax.block_until_ready(pool_embedding(xb, 4))
    refb = _reference(xb.astype(jnp.float32), 4)
    assert outb.dtype == jnp.bfloat16
    assert jnp.allclose(outb.astype(jnp.float32), refb, atol=2e-2, rtol=2e-2), \
        "mismatch vs reference (test 4, bf16)"

    print("KERNEL_OK")
</pallas_src>

<mosaic_0001>
module attributes {stable_mosaic.version = 11 : i64} {
  func.func @_pool_kernel_fused(%arg0: i32, %arg1: i32, %arg2: memref<16x256xf32, #tpu.memory_space<vmem>>, %arg3: memref<1x4x256xf32, #tpu.memory_space<vmem>>, %arg4: memref<1x16x4xf32, #tpu.memory_space<vmem>>) attributes {dimension_semantics = [#tpu.dimension_semantics<parallel>, #tpu.dimension_semantics<parallel>], iteration_bounds = array<i64: 2, 1>, scalar_prefetch = 0 : i64, scratch_operands = 0 : i64, tpu.core_type = #tpu.core_type<tc>, window_params = [{pipeline_mode = #tpu.pipeline_mode<synchronous>, transform_indices = @transform_0, window_bounds = array<i64: 16, 256>}, {transform_indices = @transform_1, window_bounds = array<i64: 1, 4, 256>}, {transform_indices = @transform_2, window_bounds = array<i64: 1, 16, 4>}]} {
    %c0 = arith.constant 0 : index
    %c0_0 = arith.constant 0 : index
    %0 = vector.load %arg2[%c0, %c0_0] : memref<16x256xf32, #tpu.memory_space<vmem>>, vector<16x256xf32>
    %c0_1 = arith.constant 0 : index
    %c0_2 = arith.constant 0 : index
    %c0_3 = arith.constant 0 : index
    %1 = vector.load %arg3[%c0_1, %c0_2, %c0_3] : memref<1x4x256xf32, #tpu.memory_space<vmem>>, vector<1x4x256xf32>
    %2 = vector.shape_cast %1 : vector<1x4x256xf32> to vector<4x256xf32>
    %cst = arith.constant dense<0.000000e+00> : vector<16x4xf32>
    %3 = tpu.matmul %0, %2, %cst {dimension_numbers = #tpu.dot_dimension_numbers<[1], [1], [0], [0], [0, 0, 1, 0], [], []>} : vector<16x256xf32>, vector<4x256xf32>, vector<16x4xf32> -> vector<16x4xf32>
    %cst_4 = arith.constant 6.250000e-02 : f32
    %4 = vector.broadcast %cst_4 : f32 to vector<16x4xf32>
    %5 = arith.mulf %3, %4 : vector<16x4xf32>
    %c0_5 = arith.constant 0 : index
    %c0_6 = arith.constant 0 : index
    %c0_7 = arith.constant 0 : index
    %6 = vector.load %arg4[%c0_5, %c0_6, %c0_7] : memref<1x16x4xf32, #tpu.memory_space<vmem>>, vector<1x16x4xf32>
    %7 = vector.shape_cast %6 : vector<1x16x4xf32> to vector<16x4xf32>
    %8 = vector.shape_cast %5 : vector<16x4xf32> to vector<1x16x4xf32>
    tpu.vector_store %arg4[%c0_5, %c0_6, %c0_7], %8 {strides = array<i32>} : memref<1x16x4xf32, #tpu.memory_space<vmem>>, vector<1x16x4xf32>,
    return
  }
  func.func @transform_0(%arg0: i32, %arg1: i32) -> (i32, i32) {
    %c0_i32 = arith.constant 0 : i32
    %c0_i32_0 = arith.constant 0 : i32
    %c0_i32_1 = arith.constant 0 : i32
    return %c0_i32, %c0_i32_0 : i32, i32
  }
  func.func @transform_1(%arg0: i32, %arg1: i32) -> (i32, i32, i32) {
    %c0_i32 = arith.constant 0 : i32
    %c0_i32_0 = arith.constant 0 : i32
    return %arg0, %arg1, %c0_i32 : i32, i32, i32
  }
  func.func @transform_2(%arg0: i32, %arg1: i32) -> (i32, i32, i32) {
    %c0_i32 = arith.constant 0 : i32
    %c0_i32_0 = arith.constant 0 : i32
    return %arg0, %c0_i32, %arg1 : i32, i32, i32
  }
}

</mosaic_0001>

<llo_original>
// kernel: tpu_custom_call.1
$region0: #{tpu_custom_call.1}
  #allocation0 [shape = 'u32[]', space=smem, size = 0x4, offset = 0x4, fixed_abs, tag = 'smem constant byte address 0x4 - core index']
  #allocation1 [shape = 'u32[144,128]{1,0:T(1,128)}', space=vmem, size = 0x12000, scoped, tag = 'internal scratch']
  %s0 = inlined_call_operand.hbm [shape: f32[16,256], index: 0, kind: input, shape index: {}]
  %s1 = inlined_call_operand.hbm [shape: f32[2,4,256], index: 1, kind: input, shape index: {}]
  %s2 = inlined_call_operand.vmem [shape: f32[2,16,4], index: 2, kind: output, shape index: {}]
  %s3 = sld [smem:[#allocation0]]
  $region49: #{tpu_custom_call.1} parent=0
    _
  %s5 = ssub.s32 1, %s3
  %s6 = scalar_select 0, %s5, %s3
  $region1: #{tpu_custom_call.1} parent=0
    #allocation2 [shape = 'u8[16384]{0}', space=vmem, size = 0x4000, scoped, tag = 'input window, operand 0, single buffered']
    #allocation3 [shape = 's32[2]{0}', space=sflag, size = 0x8, scoped, tag = 'scoped memory for tpu_custom_call.1']
    #allocation4 [shape = 'u8[8192]{0}', space=vmem, size = 0x2000, scoped, tag = 'input window, operand 1']
    #allocation5 [shape = 's32[2]{0}', space=sflag, size = 0x8, scoped, tag = 'scoped memory for tpu_custom_call.1']
    %7 = vsyncpa [#allocation3], 0
    %8 = vsyncpa [#allocation5], 0
    %s9 = scalar_lea.sflag [#allocation5], 1
    %10 = vsyncpa %s9, 0
    loop: start=0, step=1, limit=4
    $region2: #{tpu_custom_call.1} parent=1 // loop_pre_header
      _
    $region3: #{tpu_custom_call.1} parent=1 // loop_header
      %s12 = sphi 0, %s16
      %p13 = scmp.ge.s32.totalorder %s12, 4
      %s19 = sphi 0, %s31
      %s20 = sphi 0, %s27
      %s21 = sphi 0, %s19
      %s22 = sphi 0, %s20
      %s23 = sphi 0, %s21
      %s24 = sphi 0, %s22
      %s32 = sphi 0, %s32
      %s34 = sphi 0, %s32
      %s35 = sphi 0, %s34
      %s49 = sphi 0, %s35
      %s57 = sphi 0, %s59
      %s60 = sphi 0, %s57
      %s61 = sphi 0, %s60
      %s77 = sphi 0, %s61
      %s85 = sphi 0, %s87
      %s88 = sphi 0, %s85
      %s89 = sphi 0, %s88
      %s105 = sphi 0, %s89
    $region4: #{tpu_custom_call.1} parent=1 // loop_header_branch
      %15 = sbr.rel (%p13) target = $region8
    $region5: #{tpu_custom_call.1} parent=1 // loop_body
      %s17 = ssub.s32 %s12, 1
      %s18 = ssub.s32 %s12, 2
      %s25 = sadd.s32 1, %s20
      %p26 = scmp.ge.s32.totalorder %s25, 1
      %s27 = scalar_select %p26, 0, %s25
      %s28 = sadd.s32 1, %s19
      %s29 = scalar_select %p26, %s28, %s19
      %p30 = scmp.ge.s32.totalorder %s29, 2
      %s31 = scalar_select %p30, 0, %s29
      %s33 = sadd.s32 %s32, 1
      %p36 = scmp.eq.s32.totalorder %s12, 1
      %p37 = scmp.ne.s32.totalorder %s32, %s34
      %p38 = scmp.eq.s32.totalorder %s12, 0
      %p39 = por %p37, %p38
      %p40 = scmp.ne.s32.totalorder %s32, %s34
      %p41 = scmp.eq.s32.totalorder %s17, 1
      %p42 = por %p40, %p41
      %p43 = scmp.ne.s32.totalorder %s34, %s35
      %p44 = scmp.eq.s32.totalorder %s17, 0
      %p45 = por %p43, %p44
      %p46 = scmp.ne.s32.totalorder %s34, %s35
      %p47 = scmp.eq.s32.totalorder %s18, 1
      %p48 = por %p46, %p47
      %p50 = scmp.ne.s32.totalorder %s35, %s49
      %p51 = scmp.eq.s32.totalorder %s18, 0
      %p52 = por %p50, %p51
      %s53 = ssub.s32 %s19, %s31
      %s54 = ssub.s32 %s20, %s27
      %s55 = sor.u32 %s53, %s54
      %p56 = scmp.eq.s32.totalorder %s55, 0
      %s58 = sadd.s32 %s57, 1
      %s59 = scalar_select %p56, %s57, %s58
      %p62 = pneg %p56
      %p63 = scmp.eq.s32.totalorder %s12, 1
      %p64 = por %p62, %p63
      %p65 = scmp.ne.s32.totalorder %s57, %s60
      %p66 = scmp.eq.s32.totalorder %s12, 0
      %p67 = por %p65, %p66
      %p68 = scmp.ne.s32.totalorder %s57, %s60
      %p69 = scmp.eq.s32.totalorder %s17, 1
      %p70 = por %p68, %p69
      %p71 = scmp.ne.s32.totalorder %s60, %s61
      %p72 = scmp.eq.s32.totalorder %s17, 0
      %p73 = por %p71, %p72
      %p74 = scmp.ne.s32.totalorder %s60, %s61
      %p75 = scmp.eq.s32.totalorder %s18, 1
      %p76 = por %p74, %p75
      %p78 = scmp.ne.s32.totalorder %s61, %s77
      %p79 = scmp.eq.s32.totalorder %s18, 0
      %p80 = por %p78, %p79
      %s81 = ssub.s32 %s19, %s31
      %s82 = ssub.s32 %s20, %s27
      %s83 = sor.u32 %s81, %s82
      %p84 = scmp.eq.s32.totalorder %s83, 0
      %s86 = sadd.s32 %s85, 1
      %s87 = scalar_select %p84, %s85, %s86
      %p90 = pneg %p84
      %p91 = scmp.eq.s32.totalorder %s12, 1
      %p92 = por %p90, %p91
      %p93 = scmp.ne.s32.totalorder %s85, %s88
      %p94 = scmp.eq.s32.totalorder %s12, 0
      %p95 = por %p93, %p94
      %p96 = scmp.ne.s32.totalorder %s85, %s88
      %p97 = scmp.eq.s32.totalorder %s17, 1
      %p98 = por %p96, %p97
      %p99 = scmp.ne.s32.totalorder %s88, %s89
      %p100 = scmp.eq.s32.totalorder %s17, 0
      %p101 = por %p99, %p100
      %p102 = scmp.ne.s32.totalorder %s88, %s89
      %p103 = scmp.eq.s32.totalorder %s18, 1
      %p104 = por %p102, %p103
      %p106 = scmp.ne.s32.totalorder %s89, %s105
      %p107 = scmp.eq.s32.totalorder %s18, 0
      %p108 = por %p106, %p107
      %p109 = scmp.le.s32.totalorder 1, %s12
      %p110 = scmp.lt.s32.totalorder %s12, 3
      %p111 = pnand %p109, %p110
      %p112 = pneg %p111
      // Predicated region
      $region9: #{tpu_custom_call.1} parent=5 // pred_check
        _
      $region10: #{tpu_custom_call.1} parent=5 // pred_check_branch
        %114 = sbr.rel (%p111) target = $region12
      $region11: #{tpu_custom_call.1} parent=5 // pred_region
        %s115 = ssub.s32 %s12, 1
        // Predicated region
        $region13: #{tpu_custom_call.1} parent=11 // pred_check
          %p116 = pneg %p45
        $region14: #{tpu_custom_call.1} parent=11 // pred_check_branch
          %118 = sbr.rel (%p116) target = $region16
        $region15: #{tpu_custom_call.1} parent=11 // pred_region
          %s120 = ssub.s32 512, 512
          %121 = vsyncadd [#allocation3], %s120
          %s122 = sshll.u32 [#allocation2], 4
          %s123 = int_to_ptr.vmem [resolvable:$true] %s122
          %128 = dma.hbm_to_vmem [thread:$0]  %s0, 512, %s123, [#allocation3], 256, 256, 16
        $region16: #{tpu_custom_call.1} parent=11 // pred_fallthru
          _
      $region12: #{tpu_custom_call.1} parent=5 // pred_fallthru
        _
      %p129 = scmp.lt.s32.totalorder %s12, 2
      // Predicated region
      $region17: #{tpu_custom_call.1} parent=5 // pred_check
        %p130 = pneg %p129
      $region18: #{tpu_custom_call.1} parent=5 // pred_check_branch
        %132 = sbr.rel (%p130) target = $region20
      $region19: #{tpu_custom_call.1} parent=5 // pred_region
        // Predicated region
        $region21: #{tpu_custom_call.1} parent=19 // pred_check
          %p133 = pneg %p67
        $region22: #{tpu_custom_call.1} parent=19 // pred_check_branch
          %135 = sbr.rel (%p133) target = $region24
        $region23: #{tpu_custom_call.1} parent=19 // pred_region
          %s136 = sand.u32 %s57, 1
          %s137 = scalar_lea.sflag [#allocation5], %s136
          %s138 = sand.u32 %s57, 1
          %s139 = smul.addr %s138, 8
          %s140 = scalar_lea.vmem [#allocation4], %s139
          %s142 = ssub.s32 128, 128
          %143 = vsyncadd %s137, %s142
          %s144 = smul.addr %s20, 2
          %s145 = smul.addr %s19, 2
          %s146 = sadd.s32 %s144, %s145
          %s147 = smul.addr %s146, 64
          %s148 = scalar_lea.hbm %s1, %s147
          %s150 = sshll.u32 %s140, 4
          %s151 = int_to_ptr.vmem [resolvable:$true] %s150
          %153 = dma.hbm_to_vmem [thread:$0]  %s148, 128, %s151, %s137
        $region24: #{tpu_custom_call.1} parent=19 // pred_fallthru
          _
      $region20: #{tpu_custom_call.1} parent=5 // pred_fallthru
        _
      %p154 = scmp.le.s32.totalorder 1, %s12
      %p155 = scmp.lt.s32.totalorder %s12, 3
      %p156 = pnand %p154, %p155
      %p157 = pneg %p156
      // Predicated region
      $region25: #{tpu_custom_call.1} parent=5 // pred_check
        _
      $region26: #{tpu_custom_call.1} parent=5 // pred_check_branch
        %159 = sbr.rel (%p156) target = $region28
      $region27: #{tpu_custom_call.1} parent=5 // pred_region
        %s160 = ssub.s32 %s12, 1
        // Predicated region
        $region29: #{tpu_custom_call.1} parent=27 // pred_check
          %p161 = pneg %p45
        $region30: #{tpu_custom_call.1} parent=27 // pred_check_branch
          %163 = sbr.rel (%p161) target = $region32
        $region31: #{tpu_custom_call.1} parent=27 // pred_region
          %164 = dma.done [#allocation3], 512
        $region32: #{tpu_custom_call.1} parent=27 // pred_fallthru
          _
        %s165 = sand.u32 %s60, 1
        %s166 = scalar_lea.sflag [#allocation5], %s165
        %s167 = sand.u32 %s60, 1
        %s168 = smul.addr %s167, 8
        %s169 = scalar_lea.vmem [#allocation4], %s168
        // Predicated region
        $region33: #{tpu_custom_call.1} parent=27 // pred_check
          %p170 = pneg %p73
        $region34: #{tpu_custom_call.1} parent=27 // pred_check_branch
          %172 = sbr.rel (%p170) target = $region36
        $region35: #{tpu_custom_call.1} parent=27 // pred_region
          %173 = dma.done %s166, 128
        $region36: #{tpu_custom_call.1} parent=27 // pred_fallthru
          _
        %p174 = pneg %p45
        %p175 = pneg %p42
        %s176 = sand.u32 %s60, 1
        %s177 = scalar_lea.sflag [#allocation5], %s176
        %s178 = sand.u32 %s60, 1
        %s179 = smul.addr %s178, 8
        %s180 = scalar_lea.vmem [#allocation4], %s179
        %p181 = pneg %p73
        %p182 = pneg %p70
        %p183 = pneg %p101
        %p184 = pneg %p98
        %p185 = scmp.lt.s32.totalorder %s21, 1
        %s186 = scalar_select %p185, %s21, 1
        %p187 = scmp.lt.s32.totalorder %s22, 0
        %s188 = scalar_select %p187, %s22, 0
        %s189 = smul.addr %s186, 2
        %s190 = sadd.s32 %s188, %s189
        %s191 = smul.addr %s190, 8
        %s192 = scalar_lea.vmem %s2, %s191
        %p193 = scmp.lt.s32.totalorder %s21, 1
        %s194 = scalar_select %p193, %s21, 1
        %p195 = scmp.lt.s32.totalorder %s22, 0
        %s196 = scalar_select %p195, %s22, 0
        %s197 = smul.addr %s194, 2
        %s198 = sadd.s32 %s196, %s197
        %s199 = smul.addr %s198, 8
        %s200 = scalar_lea.vmem %s2, %s199
        %v201 = vld [vmem:[#allocation2] sm:$0xff]
        %v202 = vld [vmem:[#allocation2 + $0x8] sm:$0xff]
        %v203 = vld [vmem:[#allocation2 + $0x10] sm:$0xff]
        %v204 = vld [vmem:[#allocation2 + $0x18] sm:$0xff]
        %v205 = vld [vmem:[%s169] sm:$0xff]
        %v207 = vcombine.high %v205, %v205
        %209 = vmatprep.subr.mxu0 %v207
        %210 = vmatpush1.xpose.msra.mxu0 %v205
        %211 = vmatprep.subr.mxu0 0.0
        %212 = vmatpush1.xpose.msra.mxu0 0.0
        %213 = vmatprep.subr.mxu0 0.0
        %214 = vmatpush1.xpose.msra.mxu0 0.0
        %215 = vmatprep.subr.mxu0 0.0
        %216 = vmatpush1.xpose.msra.mxu0 0.0
        %217 = vmatprep.subr.mxu0 0.0
        %218 = vmatpush1.xpose.msra.mxu0 0.0
        %219 = vmatprep.subr.mxu0 0.0
        %220 = vmatpush1.xpose.msra.mxu0 0.0
        %221 = vmatprep.subr.mxu0 0.0
        %222 = vmatpush1.xpose.msra.mxu0 0.0
        %223 = vmatprep.subr.mxu0 0.0
        %224 = vmatpush1.xpose.msra.mxu0 0.0
        %225 = vmatprep.subr.mxu0 0.0
        %226 = vmatpush1.xpose.msra.mxu0 0.0
        %227 = vmatprep.subr.mxu0 0.0
        %228 = vmatpush1.xpose.msra.mxu0 0.0
        %229 = vmatprep.subr.mxu0 0.0
        %230 = vmatpush1.xpose.msra.mxu0 0.0
        %231 = vmatprep.subr.mxu0 0.0
        %232 = vmatpush1.xpose.msra.mxu0 0.0
        %233 = vmatprep.subr.mxu0 0.0
        %234 = vmatpush1.xpose.msra.mxu0 0.0
        %235 = vmatprep.subr.mxu0 0.0
        %236 = vmatpush1.xpose.msra.mxu0 0.0
        %237 = vmatprep.subr.mxu0 0.0
        %238 = vmatpush1.xpose.msra.mxu0 0.0
        %239 = vmatprep.subr.mxu0 0.0
        %240 = vmatpush1.xpose.msra.mxu0 0.0
        %241 = vmatprep.subr.mxu0 0.0
        %242 = vmatpush1.xpose.msra.mxu0 0.0
        %243 = vmatprep.subr.mxu0 0.0
        %244 = vmatpush1.xpose.msra.mxu0 0.0
        %245 = vmatprep.subr.mxu0 0.0
        %246 = vmatpush1.xpose.msra.mxu0 0.0
        %247 = vmatprep.subr.mxu0 0.0
        %248 = vmatpush1.xpose.msra.mxu0 0.0
        %249 = vmatprep.subr.mxu0 0.0
        %250 = vmatpush1.xpose.msra.mxu0 0.0
        %251 = vmatprep.subr.mxu0 0.0
        %252 = vmatpush1.xpose.msra.mxu0 0.0
        %253 = vmatprep.subr.mxu0 0.0
        %254 = vmatpush1.xpose.msra.mxu0 0.0
        %255 = vmatprep.subr.mxu0 0.0
        %256 = vmatpush1.xpose.msra.mxu0 0.0
        %257 = vmatprep.subr.mxu0 0.0
        %258 = vmatpush1.xpose.msra.mxu0 0.0
        %259 = vmatprep.subr.mxu0 0.0
        %260 = vmatpush1.xpose.msra.mxu0 0.0
        %261 = vmatprep.subr.mxu0 0.0
        %262 = vmatpush1.xpose.msra.mxu0 0.0
        %263 = vmatprep.subr.mxu0 0.0
        %264 = vmatpush1.xpose.msra.mxu0 0.0
        %265 = vmatprep.subr.mxu0 0.0
        %266 = vmatpush1.xpose.msra.mxu0 0.0
        %267 = vmatprep.subr.mxu0 0.0
        %268 = vmatpush1.xpose.msra.mxu0 0.0
        %269 = vmatprep.subr.mxu0 0.0
        %270 = vmatpush1.xpose.msra.mxu0 0.0
        %271 = vmatprep.subr.mxu0 0.0
        %272 = vmatpush1.xpose.msra.mxu0 0.0
        %273 = vmatprep.mubr.f32.mxu0 %v202
        %274 = vmatmul.mubr.f32.gmra.mrb[0].mxu0 %v201
        %v275 = vpop.f32.mrb[0].mxu0
        %v276 = vadd.f32 0.0, %v275
        %v277 = vpop.f32.mrb[0].mxu0
        %278 = vmatprep.mubr.f32.mxu0 %v204
        %279 = vmatmul.mubr.f32.gmra.mrb[0].mxu0 %v203
        %v280 = vpop.f32.mrb[0].mxu0
        %v281 = vadd.f32 0.0, %v280
        %v282 = vpop.f32.mrb[0].mxu0
        %283 = vdwg.mxu0
        %v284 = vmul.f32 %v276, 0.0625
        %v285 = vmul.f32 %v281, 0.0625
        %vm286 = vcmask 31744
        %287 = vst.msk [vmem:[%s200] sm:$0xff] %vm286, %v284
        %288 = vst.msk [vmem:[%s200 + $0x8] sm:$0xff] %vm286, %v285
        %p289 = scmp.lt.s32.totalorder %s21, 1
        %s290 = scalar_select %p289, %s21, 1
        %p291 = scmp.lt.s32.totalorder %s22, 0
        %s292 = scalar_select %p291, %s22, 0
        %s293 = smul.addr %s290, 2
        %s294 = sadd.s32 %s292, %s293
        %s295 = smul.addr %s294, 8
        %s296 = scalar_lea.vmem %s2, %s295
        // Predicated region
        $region37: #{tpu_custom_call.1} parent=27 // pred_check
          %p297 = pneg %p98
        $region38: #{tpu_custom_call.1} parent=27 // pred_check_branch
          %299 = sbr.rel (%p297) target = $region40
        $region39: #{tpu_custom_call.1} parent=27 // pred_region
          _
        $region40: #{tpu_custom_call.1} parent=27 // pred_fallthru
          _
      $region28: #{tpu_custom_call.1} parent=5 // pred_fallthru
        _
      %p300 = scmp.le.s32.totalorder 2, %s12
      // Predicated region
      $region41: #{tpu_custom_call.1} parent=5 // pred_check
        %p301 = pneg %p300
      $region42: #{tpu_custom_call.1} parent=5 // pred_check_branch
        %303 = sbr.rel (%p301) target = $region44
      $region43: #{tpu_custom_call.1} parent=5 // pred_region
        %s304 = ssub.s32 %s12, 2
        // Predicated region
        $region45: #{tpu_custom_call.1} parent=43 // pred_check
          %p305 = pneg %p104
        $region46: #{tpu_custom_call.1} parent=43 // pred_check_branch
          %307 = sbr.rel (%p305) target = $region48
        $region47: #{tpu_custom_call.1} parent=43 // pred_region
          %p308 = scmp.lt.s32.totalorder %s23, 1
          %s309 = scalar_select %p308, %s23, 1
          %p310 = scmp.lt.s32.totalorder %s24, 0
          %s311 = scalar_select %p310, %s24, 0
          %s312 = smul.addr %s309, 2
          %s313 = sadd.s32 %s311, %s312
          %s314 = smul.addr %s313, 8
          %s315 = scalar_lea.vmem %s2, %s314
        $region48: #{tpu_custom_call.1} parent=43 // pred_fallthru
          _
      $region44: #{tpu_custom_call.1} parent=5 // pred_fallthru
        _
    $region6: #{tpu_custom_call.1} parent=1 // loop_footer
      %s16 = sadd.s32 1, %s12
    $region7: #{tpu_custom_call.1} parent=1 // loop_footer_branch
      %11 = sbr.rel target = $region3
    $region8: #{tpu_custom_call.1} parent=1 // loop_exit
      _
    %316 = vsyncpa [#allocation3], 1
    %s317 = scalar_lea.sflag [#allocation3], 1
    %318 = vsyncpa %s317, 1
    %319 = vsyncpa [#allocation5], 1
    %s320 = scalar_lea.sflag [#allocation5], 1
    %321 = vsyncpa %s320, 1

</llo_original>
